<compile_context>
chip_gen: v7x
topology: tpu7x:2x2x1
jax: 0.10.0
libtpu: 0.0.40
codegen_flags: <defaults>
</compile_context>

<pallas_src>
import functools

import jax
import jax.numpy as jnp
from jax.experimental import pallas as pl
from jax.experimental.pallas import tpu as pltpu


def _dap_kernel(x_ref, w_ref, b_ref, o_ref, *, temperature, temp_factor):
    # x_ref: (C_in, TP)   w_ref: (C_out, C_in)   b_ref: (C_out, 1) f32   o_ref: (C, TP)
    x = x_ref[...]
    # Tiny (C_out, C_in) x (C_in, TP) matmul; pixels stay on lanes. f32 accumulation.
    proj = jnp.dot(w_ref[...], x, preferred_element_type=jnp.float32)  # (C_out, TP)
    proj = proj + b_ref[...]                                           # bias bcast over lanes
    if temperature:
        # dap_layer has C_out == 1: out = x * (temp + temp_factor), fused in-kernel.
        o_ref[...] = (x.astype(jnp.float32) * (proj + temp_factor)).astype(o_ref.dtype)
    else:
        o_ref[...] = proj.astype(o_ref.dtype)


def _pick_tile_p(hw, bs, cap=4096):
    """Pixel-axis tile: 128-aligned and large (amortize per-step overhead), small enough
    to be trivially v7x-VMEM-safe, and giving >=2 parallel grid steps when possible."""
    if hw % 128 != 0:
        # Full-extent last-dim block is always legal, even when not 128-aligned.
        return hw
    tile = min(hw, cap)
    if bs < 2 and hw // tile < 2 and hw >= 256:
        # Split so the second TensorCore (v7x megacore) gets work.
        tile = max(128, (hw // 2) // 128 * 128)
    return tile


def displacement_aware_projection(x, conv_weight, conv_bias, *,
                                  temperature=False, temp_factor=1e-6,
                                  compute_dtype=None, tile_cap=4096):
    """
    x           : (bs, 1, du, dv, h, w)
    conv_weight : (C_out, C_in, 1, 1)   PyTorch Conv2d weight layout
                  C_out = du*dv (temperature=False) or 1 (temperature=True)
    conv_bias   : (C_out,)
    compute_dtype: optional (e.g. jnp.bfloat16) to halve HBM traffic; accumulation is f32.
    Returns     : (bs, 1, du, dv, h, w) in x.dtype
    """
    out_dtype = x.dtype
    x = jnp.squeeze(x, axis=1)                      # (bs, du, dv, h, w)
    bs, du, dv, h, w = x.shape
    dim_c = du * dv
    hw = h * w
    x3 = x.reshape(bs, dim_c, hw)                   # free reshape: channels on sublanes,
                                                    # pixels on lanes (no transpose)

    c_out = conv_weight.shape[0]
    w_mat = conv_weight.reshape(c_out, dim_c)       # (C_out, C_in)
    bias_col = conv_bias.reshape(c_out, 1).astype(jnp.float32)

    if compute_dtype is not None:
        x3 = x3.astype(compute_dtype)
        w_mat = w_mat.astype(compute_dtype)

    tile_p = _pick_tile_p(hw, bs, tile_cap)
    n_tiles = pl.cdiv(hw, tile_p)                   # partial tail block handled by Pallas

    kernel = functools.partial(_dap_kernel,
                               temperature=bool(temperature),
                               temp_factor=float(temp_factor))

    out3 = pl.pallas_call(
        kernel,
        out_shape=jax.ShapeDtypeStruct((bs, dim_c, hw), out_dtype),
        grid_spec=pltpu.PrefetchScalarGridSpec(
            num_scalar_prefetch=0,
            grid=(bs, n_tiles),
            in_specs=[
                pl.BlockSpec((None, dim_c, tile_p), lambda b, i: (b, 0, i)),
                pl.BlockSpec((c_out, dim_c), lambda b, i: (0, 0)),
                pl.BlockSpec((c_out, 1), lambda b, i: (0, 0)),
            ],
            out_specs=pl.BlockSpec((None, dim_c, tile_p), lambda b, i: (b, 0, i)),
        ),
        compiler_params=pltpu.CompilerParams(
            dimension_semantics=("parallel", "parallel")),
    )(x3, w_mat, bias_col)

    return out3.reshape(bs, du, dv, h, w)[:, None]  # (bs, 1, du, dv, h, w)


if __name__ == "__main__":
    # Small shapes consistent with the module: max_displacement=1 -> dim_c = 9
    max_displacement = 1
    du = dv = 2 * max_displacement + 1
    dim_c = du * dv
    bs, h, w = 2, 16, 16

    key = jax.random.PRNGKey(0)
    kx, kw, kb, kwt, kbt = jax.random.split(key, 5)

    x = jax.random.normal(kx, (bs, 1, du, dv, h, w), dtype=jnp.float32)
    # Conv2d(dim_c, dim_c, 1) with bias  (temperature=False / default path)
    conv_weight = (jax.random.normal(kw, (dim_c, dim_c, 1, 1), dtype=jnp.float32)
                   * (1.0 / jnp.sqrt(dim_c)))
    conv_bias = jax.random.normal(kb, (dim_c,), dtype=jnp.float32) * 0.01
    # Conv2d(dim_c, 1, 1) with bias  (temperature=True path)
    conv_weight_t = (jax.random.normal(kwt, (1, dim_c, 1, 1), dtype=jnp.float32)
                     * (1.0 / jnp.sqrt(dim_c)))
    conv_bias_t = jax.random.normal(kbt, (1,), dtype=jnp.float32) * 0.01

    # ---- default path (temperature=False), f32 ----
    out = jax.block_until_ready(
        displacement_aware_projection(x, conv_weight, conv_bias))

    x_sq = x[:, 0].reshape(bs, dim_c, h, w)
    ref = (jnp.einsum('oc,bchw->bohw', conv_weight[:, :, 0, 0], x_sq)
           + conv_bias[None, :, None, None])
    ref = ref.reshape(bs, du, dv, h, w)[:, None]
    assert out.shape == (bs, 1, du, dv, h, w)
    assert jnp.allclose(out, ref, atol=1e-5, rtol=1e-5)

    # ---- temperature path (fused in-kernel), f32 ----
    temp_factor = 1e-6
    out_t = jax.block_until_ready(
        displacement_aware_projection(x, conv_weight_t, conv_bias_t,
                                      temperature=True, temp_factor=temp_factor))
    temp = (jnp.einsum('oc,bchw->bohw', conv_weight_t[:, :, 0, 0], x_sq)
            + conv_bias_t[None, :, None, None] + temp_factor)
    ref_t = (x_sq * temp).reshape(bs, du, dv, h, w)[:, None]
    assert jnp.allclose(out_t, ref_t, atol=1e-5, rtol=1e-5)

    # ---- bf16 compute (halves HBM traffic on v6e/v7x), f32 accumulation ----
    out_bf = jax.block_until_ready(
        displacement_aware_projection(x, conv_weight, conv_bias,
                                      compute_dtype=jnp.bfloat16))
    assert jnp.allclose(out_bf, ref, atol=1e-1, rtol=1e-1)

    print("KERNEL_OK")
</pallas_src>

<mosaic_0001>
module attributes {stable_mosaic.version = 11 : i64} {
  func.func @_dap_kernel(%arg0: i32, %arg1: i32, %arg2: memref<1x9x256xf32, #tpu.memory_space<vmem>>, %arg3: memref<9x9xf32, #tpu.memory_space<vmem>>, %arg4: memref<9x1xf32, #tpu.memory_space<vmem>>, %arg5: memref<1x9x256xf32, #tpu.memory_space<vmem>>) attributes {dimension_semantics = [#tpu.dimension_semantics<parallel>, #tpu.dimension_semantics<parallel>], iteration_bounds = array<i64: 2, 1>, scalar_prefetch = 0 : i64, scratch_operands = 0 : i64, tpu.core_type = #tpu.core_type<tc>, window_params = [{transform_indices = @transform_0, window_bounds = array<i64: 1, 9, 256>}, {pipeline_mode = #tpu.pipeline_mode<synchronous>, transform_indices = @transform_1, window_bounds = array<i64: 9, 9>}, {pipeline_mode = #tpu.pipeline_mode<synchronous>, transform_indices = @transform_2, window_bounds = array<i64: 9, 1>}, {transform_indices = @transform_3, window_bounds = array<i64: 1, 9, 256>}]} {
    %c0 = arith.constant 0 : index
    %c0_0 = arith.constant 0 : index
    %c0_1 = arith.constant 0 : index
    %0 = vector.load %arg2[%c0, %c0_0, %c0_1] : memref<1x9x256xf32, #tpu.memory_space<vmem>>, vector<1x9x256xf32>
    %1 = vector.shape_cast %0 : vector<1x9x256xf32> to vector<9x256xf32>
    %c0_2 = arith.constant 0 : index
    %c0_3 = arith.constant 0 : index
    %2 = vector.load %arg3[%c0_2, %c0_3] : memref<9x9xf32, #tpu.memory_space<vmem>>, vector<9x9xf32>
    %cst = arith.constant dense<0.000000e+00> : vector<9x256xf32>
    %3 = tpu.matmul %2, %1, %cst {dimension_numbers = #tpu.dot_dimension_numbers<[1], [0], [0], [1], [0, 0, 1, 1], [], []>} : vector<9x9xf32>, vector<9x256xf32>, vector<9x256xf32> -> vector<9x256xf32>
    %c0_4 = arith.constant 0 : index
    %c0_5 = arith.constant 0 : index
    %4 = vector.load %arg4[%c0_4, %c0_5] : memref<9x1xf32, #tpu.memory_space<vmem>>, vector<9x1xf32>
    %5 = vector.broadcast %4 : vector<9x1xf32> to vector<9x256xf32>
    %6 = arith.addf %3, %5 : vector<9x256xf32>
    %c0_6 = arith.constant 0 : index
    %c0_7 = arith.constant 0 : index
    %c0_8 = arith.constant 0 : index
    %7 = vector.load %arg5[%c0_6, %c0_7, %c0_8] : memref<1x9x256xf32, #tpu.memory_space<vmem>>, vector<1x9x256xf32>
    %8 = vector.shape_cast %7 : vector<1x9x256xf32> to vector<9x256xf32>
    %9 = vector.shape_cast %6 : vector<9x256xf32> to vector<1x9x256xf32>
    tpu.vector_store %arg5[%c0_6, %c0_7, %c0_8], %9 {strides = array<i32>} : memref<1x9x256xf32, #tpu.memory_space<vmem>>, vector<1x9x256xf32>,
    return
  }
  func.func @transform_0(%arg0: i32, %arg1: i32) -> (i32, i32, i32) {
    %c0_i32 = arith.constant 0 : i32
    %c0_i32_0 = arith.constant 0 : i32
    return %arg0, %c0_i32, %arg1 : i32, i32, i32
  }
  func.func @transform_1(%arg0: i32, %arg1: i32) -> (i32, i32) {
    %c0_i32 = arith.constant 0 : i32
    %c0_i32_0 = arith.constant 0 : i32
    %c0_i32_1 = arith.constant 0 : i32
    return %c0_i32, %c0_i32_0 : i32, i32
  }
  func.func @transform_2(%arg0: i32, %arg1: i32) -> (i32, i32) {
    %c0_i32 = arith.constant 0 : i32
    %c0_i32_0 = arith.constant 0 : i32
    %c0_i32_1 = arith.constant 0 : i32
    return %c0_i32, %c0_i32_0 : i32, i32
  }
  func.func @transform_3(%arg0: i32, %arg1: i32) -> (i32, i32, i32) {
    %c0_i32 = arith.constant 0 : i32
    %c0_i32_0 = arith.constant 0 : i32
    return %arg0, %c0_i32, %arg1 : i32, i32, i32
  }
}

</mosaic_0001>

<llo_original>
// kernel: tpu_custom_call.1
$region0: #{tpu_custom_call.1}
  #allocation0 [shape = 'u32[]', space=smem, size = 0x4, offset = 0x4, fixed_abs, tag = 'smem constant byte address 0x4 - core index']
  #allocation1 [shape = 'u32[144,128]{1,0:T(1,128)}', space=vmem, size = 0x12000, scoped, tag = 'internal scratch']
  %s0 = inlined_call_operand.vmem [shape: f32[2,9,256], index: 0, kind: input, shape index: {}]
  %s1 = inlined_call_operand.vmem [shape: f32[9,9], index: 1, kind: input, shape index: {}]
  %s2 = inlined_call_operand.vmem [shape: f32[9,1], index: 2, kind: input, shape index: {}]
  %s3 = inlined_call_operand.vmem [shape: f32[2,9,256], index: 3, kind: output, shape index: {}]
  %s4 = sld [smem:[#allocation0]]
  $region45: #{tpu_custom_call.1} parent=0
    _
  %s6 = ssub.s32 1, %s4
  %s7 = scalar_select 0, %s6, %s4
  loop: start=0, step=1, limit=4
  $region2: #{tpu_custom_call.1} parent=0 // loop_pre_header
    _
  $region3: #{tpu_custom_call.1} parent=0 // loop_header
    %s9 = sphi 0, %s13
    %p10 = scmp.ge.s32.totalorder %s9, 4
    %s16 = sphi 0, %s28
    %s17 = sphi 0, %s24
    %s18 = sphi 0, %s16
    %s19 = sphi 0, %s17
    %s20 = sphi 0, %s18
    %s21 = sphi 0, %s19
    %s33 = sphi 0, %s35
    %s36 = sphi 0, %s33
    %s37 = sphi 0, %s36
    %s53 = sphi 0, %s37
    %s57 = sphi 0, %s57
    %s59 = sphi 0, %s57
    %s60 = sphi 0, %s59
    %s74 = sphi 0, %s60
    %s78 = sphi 0, %s78
    %s80 = sphi 0, %s78
    %s81 = sphi 0, %s80
    %s95 = sphi 0, %s81
    %s103 = sphi 0, %s105
    %s106 = sphi 0, %s103
    %s107 = sphi 0, %s106
    %s123 = sphi 0, %s107
  $region4: #{tpu_custom_call.1} parent=0 // loop_header_branch
    %12 = sbr.rel (%p10) target = $region8
  $region5: #{tpu_custom_call.1} parent=0 // loop_body
    %s14 = ssub.s32 %s9, 1
    %s15 = ssub.s32 %s9, 2
    %s22 = sadd.s32 1, %s17
    %p23 = scmp.ge.s32.totalorder %s22, 1
    %s24 = scalar_select %p23, 0, %s22
    %s25 = sadd.s32 1, %s16
    %s26 = scalar_select %p23, %s25, %s16
    %p27 = scmp.ge.s32.totalorder %s26, 2
    %s28 = scalar_select %p27, 0, %s26
    %s29 = ssub.s32 %s16, %s28
    %s30 = ssub.s32 %s17, %s24
    %s31 = sor.u32 %s29, %s30
    %p32 = scmp.eq.s32.totalorder %s31, 0
    %s34 = sadd.s32 %s33, 1
    %s35 = scalar_select %p32, %s33, %s34
    %p38 = pneg %p32
    %p39 = scmp.eq.s32.totalorder %s9, 1
    %p40 = por %p38, %p39
    %p41 = scmp.ne.s32.totalorder %s33, %s36
    %p42 = scmp.eq.s32.totalorder %s9, 0
    %p43 = por %p41, %p42
    %p44 = scmp.ne.s32.totalorder %s33, %s36
    %p45 = scmp.eq.s32.totalorder %s14, 1
    %p46 = por %p44, %p45
    %p47 = scmp.ne.s32.totalorder %s36, %s37
    %p48 = scmp.eq.s32.totalorder %s14, 0
    %p49 = por %p47, %p48
    %p50 = scmp.ne.s32.totalorder %s36, %s37
    %p51 = scmp.eq.s32.totalorder %s15, 1
    %p52 = por %p50, %p51
    %p54 = scmp.ne.s32.totalorder %s37, %s53
    %p55 = scmp.eq.s32.totalorder %s15, 0
    %p56 = por %p54, %p55
    %s58 = sadd.s32 %s57, 1
    %p61 = scmp.eq.s32.totalorder %s9, 1
    %p62 = scmp.ne.s32.totalorder %s57, %s59
    %p63 = scmp.eq.s32.totalorder %s9, 0
    %p64 = por %p62, %p63
    %p65 = scmp.ne.s32.totalorder %s57, %s59
    %p66 = scmp.eq.s32.totalorder %s14, 1
    %p67 = por %p65, %p66
    %p68 = scmp.ne.s32.totalorder %s59, %s60
    %p69 = scmp.eq.s32.totalorder %s14, 0
    %p70 = por %p68, %p69
    %p71 = scmp.ne.s32.totalorder %s59, %s60
    %p72 = scmp.eq.s32.totalorder %s15, 1
    %p73 = por %p71, %p72
    %p75 = scmp.ne.s32.totalorder %s60, %s74
    %p76 = scmp.eq.s32.totalorder %s15, 0
    %p77 = por %p75, %p76
    %s79 = sadd.s32 %s78, 1
    %p82 = scmp.eq.s32.totalorder %s9, 1
    %p83 = scmp.ne.s32.totalorder %s78, %s80
    %p84 = scmp.eq.s32.totalorder %s9, 0
    %p85 = por %p83, %p84
    %p86 = scmp.ne.s32.totalorder %s78, %s80
    %p87 = scmp.eq.s32.totalorder %s14, 1
    %p88 = por %p86, %p87
    %p89 = scmp.ne.s32.totalorder %s80, %s81
    %p90 = scmp.eq.s32.totalorder %s14, 0
    %p91 = por %p89, %p90
    %p92 = scmp.ne.s32.totalorder %s80, %s81
    %p93 = scmp.eq.s32.totalorder %s15, 1
    %p94 = por %p92, %p93
    %p96 = scmp.ne.s32.totalorder %s81, %s95
    %p97 = scmp.eq.s32.totalorder %s15, 0
    %p98 = por %p96, %p97
    %s99 = ssub.s32 %s16, %s28
    %s100 = ssub.s32 %s17, %s24
    %s101 = sor.u32 %s99, %s100
    %p102 = scmp.eq.s32.totalorder %s101, 0
    %s104 = sadd.s32 %s103, 1
    %s105 = scalar_select %p102, %s103, %s104
    %p108 = pneg %p102
    %p109 = scmp.eq.s32.totalorder %s9, 1
    %p110 = por %p108, %p109
    %p111 = scmp.ne.s32.totalorder %s103, %s106
    %p112 = scmp.eq.s32.totalorder %s9, 0
    %p113 = por %p111, %p112
    %p114 = scmp.ne.s32.totalorder %s103, %s106
    %p115 = scmp.eq.s32.totalorder %s14, 1
    %p116 = por %p114, %p115
    %p117 = scmp.ne.s32.totalorder %s106, %s107
    %p118 = scmp.eq.s32.totalorder %s14, 0
    %p119 = por %p117, %p118
    %p120 = scmp.ne.s32.totalorder %s106, %s107
    %p121 = scmp.eq.s32.totalorder %s15, 1
    %p122 = por %p120, %p121
    %p124 = scmp.ne.s32.totalorder %s107, %s123
    %p125 = scmp.eq.s32.totalorder %s15, 0
    %p126 = por %p124, %p125
    %p127 = scmp.le.s32.totalorder 1, %s9
    %p128 = scmp.lt.s32.totalorder %s9, 3
    %p129 = pnand %p127, %p128
    %p130 = pneg %p129
    // Predicated region
    $region9: #{tpu_custom_call.1} parent=5 // pred_check
      _
    $region10: #{tpu_custom_call.1} parent=5 // pred_check_branch
      %132 = sbr.rel (%p129) target = $region12
    $region11: #{tpu_custom_call.1} parent=5 // pred_region
      %s133 = ssub.s32 %s9, 1
      // Predicated region
      $region13: #{tpu_custom_call.1} parent=11 // pred_check
        %p134 = pneg %p70
      $region14: #{tpu_custom_call.1} parent=11 // pred_check_branch
        %136 = sbr.rel (%p134) target = $region16
      $region15: #{tpu_custom_call.1} parent=11 // pred_region
        _
      $region16: #{tpu_custom_call.1} parent=11 // pred_fallthru
        _
      // Predicated region
      $region17: #{tpu_custom_call.1} parent=11 // pred_check
        %p137 = pneg %p91
      $region18: #{tpu_custom_call.1} parent=11 // pred_check_branch
        %139 = sbr.rel (%p137) target = $region20
      $region19: #{tpu_custom_call.1} parent=11 // pred_region
        _
      $region20: #{tpu_custom_call.1} parent=11 // pred_fallthru
        _
    $region12: #{tpu_custom_call.1} parent=5 // pred_fallthru
      _
    %p140 = scmp.lt.s32.totalorder %s9, 2
    // Predicated region
    $region21: #{tpu_custom_call.1} parent=5 // pred_check
      %p141 = pneg %p140
    $region22: #{tpu_custom_call.1} parent=5 // pred_check_branch
      %143 = sbr.rel (%p141) target = $region24
    $region23: #{tpu_custom_call.1} parent=5 // pred_region
      // Predicated region
      $region25: #{tpu_custom_call.1} parent=23 // pred_check
        %p144 = pneg %p43
      $region26: #{tpu_custom_call.1} parent=23 // pred_check_branch
        %146 = sbr.rel (%p144) target = $region28
      $region27: #{tpu_custom_call.1} parent=23 // pred_region
        %s147 = smul.u32 2, %s17
        %p148 = scmp.lt.s32.totalorder %s16, 1
        %s149 = scalar_select %p148, %s16, 1
        %p150 = scmp.lt.s32.totalorder %s147, 1
        %s151 = scalar_select %p150, %s147, 1
        %s152 = smul.addr %s149, 4
        %s153 = sadd.s32 %s151, %s152
        %s154 = smul.addr %s153, 8
        %s155 = scalar_lea.vmem %s0, %s154
        %s156 = smul.u32 2, %s17
      $region28: #{tpu_custom_call.1} parent=23 // pred_fallthru
        _
    $region24: #{tpu_custom_call.1} parent=5 // pred_fallthru
      _
    %p157 = scmp.le.s32.totalorder 1, %s9
    %p158 = scmp.lt.s32.totalorder %s9, 3
    %p159 = pnand %p157, %p158
    %p160 = pneg %p159
    // Predicated region
    $region29: #{tpu_custom_call.1} parent=5 // pred_check
      _
    $region30: #{tpu_custom_call.1} parent=5 // pred_check_branch
      %162 = sbr.rel (%p159) target = $region32
    $region31: #{tpu_custom_call.1} parent=5 // pred_region
      %s163 = ssub.s32 %s9, 1
      %s164 = smul.u32 2, %s19
      %p165 = scmp.lt.s32.totalorder %s18, 1
      %s166 = scalar_select %p165, %s18, 1
      %p167 = scmp.lt.s32.totalorder %s164, 1
      %s168 = scalar_select %p167, %s164, 1
      %s169 = smul.addr %s166, 4
      %s170 = sadd.s32 %s168, %s169
      %s171 = smul.addr %s170, 8
      %s172 = scalar_lea.vmem %s0, %s171
      %p173 = pneg %p49
      %p174 = pneg %p46
      %p175 = pneg %p70
      %p176 = pneg %p67
      %p177 = pneg %p91
      %p178 = pneg %p88
      %p179 = pneg %p119
      %p180 = pneg %p116
      %s181 = smul.u32 2, %s19
      %p182 = scmp.lt.s32.totalorder %s18, 1
      %s183 = scalar_select %p182, %s18, 1
      %p184 = scmp.lt.s32.totalorder %s181, 1
      %s185 = scalar_select %p184, %s181, 1
      %s186 = smul.addr %s183, 4
      %s187 = sadd.s32 %s185, %s186
      %s188 = smul.addr %s187, 8
      %s189 = scalar_lea.vmem %s3, %s188
      %s190 = smul.u32 2, %s19
      %p191 = scmp.lt.s32.totalorder %s18, 1
      %s192 = scalar_select %p191, %s18, 1
      %p193 = scmp.lt.s32.totalorder %s190, 1
      %s194 = scalar_select %p193, %s190, 1
      %s195 = smul.addr %s192, 4
      %s196 = sadd.s32 %s194, %s195
      %s197 = smul.addr %s196, 8
      %s198 = scalar_lea.vmem %s0, %s197
      %s199 = smul.u32 2, %s19
      %s200 = smul.u32 2, %s19
      %p201 = scmp.lt.s32.totalorder %s18, 1
      %s202 = scalar_select %p201, %s18, 1
      %p203 = scmp.lt.s32.totalorder %s200, 1
      %s204 = scalar_select %p203, %s200, 1
      %s205 = smul.addr %s202, 4
      %s206 = sadd.s32 %s204, %s205
      %s207 = smul.addr %s206, 8
      %s208 = scalar_lea.vmem %s3, %s207
      %s209 = smul.u32 2, %s19
      %v210 = vld [vmem:[%s198] sm:$0xff]
      %v211 = vld [vmem:[%s198 + $0x8] sm:$0xff]
      %v212 = vld [vmem:[%s198 + $0x10] sm:$0x1]
      %v213 = vld [vmem:[%s198 + $0x18] sm:$0x1]
      %v214 = vld [vmem:[%s1] sm:$0xff]
      %v215 = vld [vmem:[%s1 + $0x8] sm:$0x1]
      %v216 = vld [vmem:[%s2] sm:$0xff]
      %v217 = vld [vmem:[%s2 + $0x8] sm:$0x1]
      %219 = vset.pattern.permute.xlu0 0
      %220 = vperm.xlu0 %219, %v216
      %v221 = vpop.permute.xlu0 %220
      %224 = vset.pattern.permute.xlu0 0
      %225 = vperm.xlu0 %224, %v217
      %v226 = vpop.permute.xlu0 %225
      %vm228 = vcmask 72704
      %v230 = vsel %vm228, %v214, 0
      %v233 = vsel %vm228, %v215, 0
      %vm235 = vcmask 1040384
      %v237 = vsel %vm235, %v212, 0
      %v240 = vsel %vm235, %v213, 0
      %242 = vmatprep.subr.mxu0 %v211
      %243 = vmatpush1.msra.mxu0 %v210
      %244 = vmatprep.subr.mxu0 %v240
      %245 = vmatpush1.msra.mxu0 %v237
      %246 = vmatprep.subr.mxu0 0.0
      %247 = vmatpush1.msra.mxu0 0.0
      %248 = vmatprep.subr.mxu0 0.0
      %249 = vmatpush1.msra.mxu0 0.0
      %250 = vmatprep.subr.mxu0 0.0
      %251 = vmatpush1.msra.mxu0 0.0
      %252 = vmatprep.subr.mxu0 0.0
      %253 = vmatpush1.msra.mxu0 0.0
      %254 = vmatprep.subr.mxu0 0.0
      %255 = vmatpush1.msra.mxu0 0.0
      %256 = vmatprep.subr.mxu0 0.0
      %257 = vmatpush1.msra.mxu0 0.0
      %258 = vmatprep.subr.mxu0 0.0
      %259 = vmatpush1.msra.mxu0 0.0
      %260 = vmatprep.subr.mxu0 0.0
      %261 = vmatpush1.msra.mxu0 0.0
      %262 = vmatprep.subr.mxu0 0.0
      %263 = vmatpush1.msra.mxu0 0.0
      %264 = vmatprep.subr.mxu0 0.0
      %265 = vmatpush1.msra.mxu0 0.0
      %266 = vmatprep.subr.mxu0 0.0
      %267 = vmatpush1.msra.mxu0 0.0
      %268 = vmatprep.subr.mxu0 0.0
      %269 = vmatpush1.msra.mxu0 0.0
      %270 = vmatprep.subr.mxu0 0.0
      %271 = vmatpush1.msra.mxu0 0.0
      %272 = vmatprep.subr.mxu0 0.0
      %273 = vmatpush1.msra.mxu0 0.0
      %274 = vmatprep.subr.mxu0 0.0
      %275 = vmatpush1.msra.mxu0 0.0
      %276 = vmatprep.subr.mxu0 0.0
      %277 = vmatpush1.msra.mxu0 0.0
      %278 = vmatprep.subr.mxu0 0.0
      %279 = vmatpush1.msra.mxu0 0.0
      %280 = vmatprep.subr.mxu0 0.0
      %281 = vmatpush1.msra.mxu0 0.0
      %282 = vmatprep.subr.mxu0 0.0
      %283 = vmatpush1.msra.mxu0 0.0
      %284 = vmatprep.subr.mxu0 0.0
      %285 = vmatpush1.msra.mxu0 0.0
      %286 = vmatprep.subr.mxu0 0.0
      %287 = vmatpush1.msra.mxu0 0.0
      %288 = vmatprep.subr.mxu0 0.0
      %289 = vmatpush1.msra.mxu0 0.0
      %290 = vmatprep.subr.mxu0 0.0
      %291 = vmatpush1.msra.mxu0 0.0
      %292 = vmatprep.subr.mxu0 0.0
      %293 = vmatpush1.msra.mxu0 0.0
      %294 = vmatprep.subr.mxu0 0.0
      %295 = vmatpush1.msra.mxu0 0.0
      %296 = vmatprep.subr.mxu0 0.0
      %297 = vmatpush1.msra.mxu0 0.0
      %298 = vmatprep.subr.mxu0 0.0
      %299 = vmatpush1.msra.mxu0 0.0
      %300 = vmatprep.subr.mxu0 0.0
      %301 = vmatpush1.msra.mxu0 0.0
      %302 = vmatprep.subr.mxu0 0.0
      %303 = vmatpush1.msra.mxu0 0.0
      %304 = vmatprep.subr.mxu0 0.0
      %305 = vmatpush1.msra.mxu0 0.0
      %306 = vmatprep.mubr.f32.mxu0 0.0
      %307 = vmatmul.mubr.f32.gmra.mrb[0].mxu0 %v230
      %v308 = vpop.f32.mrb[0].mxu0
      %v309 = vadd.f32 %v221, %v308
      %v310 = vpop.f32.mrb[0].mxu0
      %v311 = vadd.f32 %v221, %v310
      %312 = vmatprep.mubr.f32.mxu0 0.0
      %313 = vmatmul.mubr.f32.gmra.mrb[0].mxu0 %v233
      %v314 = vpop.f32.mrb[0].mxu0
      %v315 = vadd.f32 %v226, %v314
      %v316 = vpop.f32.mrb[0].mxu0
      %v317 = vadd.f32 %v226, %v316
      %318 = vdwg.mxu0
      %319 = vst [vmem:[%s208] sm:$0xff] %v309
      %320 = vst [vmem:[%s208 + $0x8] sm:$0xff] %v311
      %321 = vst [vmem:[%s208 + $0x10] sm:$0x1] %v315
      %322 = vst [vmem:[%s208 + $0x18] sm:$0x1] %v317
      %s323 = smul.u32 2, %s19
      %p324 = scmp.lt.s32.totalorder %s18, 1
      %s325 = scalar_select %p324, %s18, 1
      %p326 = scmp.lt.s32.totalorder %s323, 1
      %s327 = scalar_select %p326, %s323, 1
      %s328 = smul.addr %s325, 4
      %s329 = sadd.s32 %s327, %s328
      %s330 = smul.addr %s329, 8
      %s331 = scalar_lea.vmem %s3, %s330
      // Predicated region
      $region33: #{tpu_custom_call.1} parent=31 // pred_check
        %p332 = pneg %p116
      $region34: #{tpu_custom_call.1} parent=31 // pred_check_branch
        %334 = sbr.rel (%p332) target = $region36
      $region35: #{tpu_custom_call.1} parent=31 // pred_region
        %s335 = smul.u32 2, %s19
      $region36: #{tpu_custom_call.1} parent=31 // pred_fallthru
        _
    $region32: #{tpu_custom_call.1} parent=5 // pred_fallthru
      _
    %p336 = scmp.le.s32.totalorder 2, %s9
    // Predicated region
    $region37: #{tpu_custom_call.1} parent=5 // pred_check
      %p337 = pneg %p336
    $region38: #{tpu_custom_call.1} parent=5 // pred_check_branch
      %339 = sbr.rel (%p337) target = $region40
    $region39: #{tpu_custom_call.1} parent=5 // pred_region
      %s340 = ssub.s32 %s9, 2
      // Predicated region
      $region41: #{tpu_custom_call.1} parent=39 // pred_check
        %p341 = pneg %p122
      $region42: #{tpu_custom_call.1} parent=39 // pred_check_branch
        %343 = sbr.rel (%p341) target = $region44
      $region43: #{tpu_custom_call.1} parent=39 // pred_region
        %s344 = smul.u32 2, %s21
        %p345 = scmp.lt.s32.totalorder %s20, 1
        %s346 = scalar_select %p345, %s20, 1
        %p347 = scmp.lt.s32.totalorder %s344, 1
        %s348 = scalar_select %p347, %s344, 1
        %s349 = smul.addr %s346, 4
        %s350 = sadd.s32 %s348, %s349
        %s351 = smul.addr %s350, 8
        %s352 = scalar_lea.vmem %s3, %s351
      $region44: #{tpu_custom_call.1} parent=39 // pred_fallthru
        _
    $region40: #{tpu_custom_call.1} parent=5 // pred_fallthru
      _
  $region6: #{tpu_custom_call.1} parent=0 // loop_footer
    %s13 = sadd.s32 1, %s9
  $region7: #{tpu_custom_call.1} parent=0 // loop_footer_branch
    %8 = sbr.rel target = $region3
  $region8: #{tpu_custom_call.1} parent=0 // loop_exit
    _

</llo_original>
